<compile_context>
chip_gen: v7x
topology: tpu7x:2x2x1
jax: 0.10.0
libtpu: 0.0.40
codegen_flags: <defaults>
</compile_context>

<pallas_src>
from typing import NamedTuple

import jax
import jax.numpy as jnp
from jax.experimental import pallas as pl
from jax.experimental.pallas import tpu as pltpu


def _round_up(x: int, m: int) -> int:
    return ((x + m - 1) // m) * m


class _Layout(NamedTuple):
    f_dyn: int
    f_stat: int
    dyn_hidden: int
    dyn_out: int
    stat_hidden: int
    ens_hidden: int
    out_dim: int
    out_pad: int     # lane-padded output width (multiple of 128)
    lanes: int       # lane width of the packed parameter buffer
    rows: int        # sublane rows of the packed parameter buffer
    off_wa: int
    off_wd2: int
    off_w1: int
    off_w2: int
    off_ba: int
    off_bd2: int
    off_b1: int
    off_b2: int


def pack_params(params):
    """Pack all weights/biases into ONE (rows, 128k) f32 buffer (single resident DMA).

    Layer-A fusion: the dynamic-branch first Linear (wd1) and the static-branch Linear
    (ws) are laid out block-diagonally, so the kernel runs both branches' first layers
    as a single matmul on concat([pooled, static]):
        WA = [[wd1, 0], [0, ws]],   bA = [bd1 | bs]
    The last layer (w2/b2) is zero-padded to a 128-lane output so stores are lane-dense.
    """
    wd1, bd1 = params["wd1"], params["bd1"]
    wd2, bd2 = params["wd2"], params["bd2"]
    ws, bs = params["ws"], params["bs"]
    w1, b1 = params["w1"], params["b1"]
    w2, b2 = params["w2"], params["b2"]

    f_dyn, dh = wd1.shape
    f_stat, sh = ws.shape
    dout = wd2.shape[1]
    eh = w1.shape[1]
    out_dim = w2.shape[1]
    assert w1.shape[0] == sh + dout, "w1 rows must match cat([static_out, dynamic_out])"

    out_pad = _round_up(out_dim, 128)
    lanes = _round_up(max(dh + sh, dout, eh, out_pad), 128)

    wa = jnp.zeros((f_dyn + f_stat, dh + sh), jnp.float32)
    wa = wa.at[:f_dyn, :dh].set(wd1)
    wa = wa.at[f_dyn:, dh:].set(ws)
    ba = jnp.concatenate([bd1, bs], axis=1)

    w2p = jnp.pad(w2, ((0, 0), (0, out_pad - out_dim)))
    b2p = jnp.pad(b2, ((0, 0), (0, out_pad - out_dim)))

    entries = [("wa", wa), ("wd2", wd2), ("w1", w1), ("w2", w2p),
               ("ba", ba), ("bd2", bd2), ("b1", b1), ("b2", b2p)]
    offs, row = {}, 0
    for name, m in entries:
        offs[name] = row
        row += _round_up(m.shape[0], 8)   # keep every in-kernel slice 8-sublane aligned
    rows = _round_up(row, 8)

    packed = jnp.zeros((rows, lanes), jnp.float32)
    for name, m in entries:
        packed = packed.at[offs[name]:offs[name] + m.shape[0], :m.shape[1]].set(m)

    layout = _Layout(
        f_dyn=f_dyn, f_stat=f_stat, dyn_hidden=dh, dyn_out=dout,
        stat_hidden=sh, ens_hidden=eh, out_dim=out_dim, out_pad=out_pad,
        lanes=lanes, rows=rows,
        off_wa=offs["wa"], off_wd2=offs["wd2"], off_w1=offs["w1"], off_w2=offs["w2"],
        off_ba=offs["ba"], off_bd2=offs["bd2"], off_b1=offs["b1"], off_b2=offs["b2"])
    return packed, layout


def _make_kernel(lo: _Layout):
    F_DYN, F_STAT = lo.f_dyn, lo.f_stat
    DH, SH, DOUT, EH = lo.dyn_hidden, lo.stat_hidden, lo.dyn_out, lo.ens_hidden

    def kernel(dyn_ref, mask_ref, stat_ref, p_ref, out_ref):
        dyn = dyn_ref[...]      # (TB, T, F_dyn) f32
        mask = mask_ref[...]    # (TB, T, F_dyn) f32
        stat = stat_ref[...]    # (TB, F_stat)   f32

        # --- dynamic_model pooling: missingness-weighted mean over time ---
        # TODO(synk): for large T this sublane reduce could be re-expressed as an MXU
        # matmul against a ones vector (einsum 'btf,t->bf') to offload the XLU.
        pooled_sum = jnp.sum(dyn * mask, axis=1)                 # (TB, F_dyn)
        denom = jnp.maximum(jnp.sum(mask, axis=1), 1.0)          # (TB, F_dyn)
        pooled = pooled_sum * pl.reciprocal(denom, approx=False)

        # --- fused first layers: block-diagonal WA on concat([pooled, static]) ---
        x_cat = jnp.concatenate([pooled, stat], axis=-1)         # (TB, F_dyn+F_stat)
        wa = p_ref[lo.off_wa:lo.off_wa + F_DYN + F_STAT, 0:DH + SH]
        ba = p_ref[lo.off_ba:lo.off_ba + 1, 0:DH + SH]
        h = jnp.maximum(jnp.dot(x_cat, wa, preferred_element_type=jnp.float32) + ba, 0.0)
        h_dyn = h[:, :DH]               # dynamic branch hidden (post-ReLU)
        stat_out = h[:, DH:DH + SH]     # static branch output   (post-ReLU)

        # --- dynamic branch second Linear (no activation) ---
        wd2 = p_ref[lo.off_wd2:lo.off_wd2 + DH, 0:DOUT]
        bd2 = p_ref[lo.off_bd2:lo.off_bd2 + 1, 0:DOUT]
        dyn_out = jnp.dot(h_dyn, wd2, preferred_element_type=jnp.float32) + bd2

        # --- ensemble MLP on torch.cat([static_out, dynamic_out], dim=1) ---
        # lane-concat (SH+DOUT lanes, one vreg) and a single dot against the full W1.
        combined = jnp.concatenate([stat_out, dyn_out], axis=-1)
        w1 = p_ref[lo.off_w1:lo.off_w1 + SH + DOUT, 0:EH]
        b1 = p_ref[lo.off_b1:lo.off_b1 + 1, 0:EH]
        h2 = jnp.maximum(jnp.dot(combined, w1, preferred_element_type=jnp.float32) + b1, 0.0)

        # --- lane-dense output layer (padded to out_pad lanes; sliced in the wrapper) ---
        w2 = p_ref[lo.off_w2:lo.off_w2 + EH, 0:lo.out_pad]
        b2 = p_ref[lo.off_b2:lo.off_b2 + 1, 0:lo.out_pad]
        out = jnp.dot(h2, w2, preferred_element_type=jnp.float32) + b2
        out_ref[...] = out.astype(out_ref.dtype)

    return kernel


def ensemble_forward(dynamic_features, missingness_mask, static_features, params,
                     *, batch_tile=None):
    """Full EnsembleModel forward as a single batched Pallas call."""
    packed, lo = pack_params(params)

    B, T, f_dyn = dynamic_features.shape
    assert f_dyn == lo.f_dyn
    assert static_features.shape == (B, lo.f_stat)

    dynamic_features = dynamic_features.astype(jnp.float32)
    missingness_mask = missingness_mask.astype(jnp.float32)   # accept bool/int masks too
    static_features = static_features.astype(jnp.float32)

    if batch_tile is None:
        batch_tile = min(_round_up(B, 8), 512)   # big tiles amortize per-step overhead
    tb = batch_tile
    assert tb % 8 == 0, "batch_tile must be a multiple of 8 (sublane tile)"

    b_pad = _round_up(max(B, tb), tb)
    if b_pad != B:
        dynamic_features = jnp.pad(dynamic_features, ((0, b_pad - B), (0, 0), (0, 0)))
        missingness_mask = jnp.pad(missingness_mask, ((0, b_pad - B), (0, 0), (0, 0)))
        static_features = jnp.pad(static_features, ((0, b_pad - B), (0, 0)))

    grid = (b_pad // tb,)
    kernel = _make_kernel(lo)

    out_padded = pl.pallas_call(
        kernel,
        out_shape=jax.ShapeDtypeStruct((b_pad, lo.out_pad), jnp.float32),
        grid=grid,
        in_specs=[
            pl.BlockSpec((tb, T, f_dyn), lambda i: (i, 0, 0)),
            pl.BlockSpec((tb, T, f_dyn), lambda i: (i, 0, 0)),
            pl.BlockSpec((tb, lo.f_stat), lambda i: (i, 0)),
            # packed params: constant index_map -> fetched once, stays VMEM-resident.
            pl.BlockSpec((lo.rows, lo.lanes), lambda i: (0, 0)),
        ],
        out_specs=pl.BlockSpec((tb, lo.out_pad), lambda i: (i, 0)),
        compiler_params=pltpu.CompilerParams(
            dimension_semantics=("parallel",)),   # shards batch across v7x's 2 TCs
    )(dynamic_features, missingness_mask, static_features, packed)

    return out_padded[:B, :lo.out_dim]


def ensemble_reference(dynamic_features, missingness_mask, static_features, params):
    """Pure-JAX reference mirroring the PyTorch forward semantics (unfused)."""
    masked = dynamic_features * missingness_mask
    pooled = masked.sum(axis=1) / jnp.maximum(missingness_mask.sum(axis=1), 1.0)
    h_dyn = jnp.maximum(pooled @ params["wd1"] + params["bd1"], 0.0)
    dyn_out = h_dyn @ params["wd2"] + params["bd2"]
    stat_out = jnp.maximum(static_features @ params["ws"] + params["bs"], 0.0)
    combined = jnp.concatenate([stat_out, dyn_out], axis=1)   # torch.cat([static, dynamic])
    h = jnp.maximum(combined @ params["w1"] + params["b1"], 0.0)
    return h @ params["w2"] + params["b2"]


def init_params(key, f_dyn, f_stat, dyn_hidden, dynamic_dim_out,
                scalar_mlp_hidden_dim, ensemble_mlp_hidden_dim, output_dim):
    keys = jax.random.split(key, 5)

    def lin(k, fan_in, fan_out):
        # PyTorch-like uniform(-1/sqrt(fan_in), 1/sqrt(fan_in)) init, weights as (in, out).
        kw, kb = jax.random.split(k)
        bound = 1.0 / jnp.sqrt(float(fan_in))
        w = jax.random.uniform(kw, (fan_in, fan_out), jnp.float32, -bound, bound)
        b = jax.random.uniform(kb, (1, fan_out), jnp.float32, -bound, bound)
        return w, b

    wd1, bd1 = lin(keys[0], f_dyn, dyn_hidden)
    wd2, bd2 = lin(keys[1], dyn_hidden, dynamic_dim_out)
    ws, bs = lin(keys[2], f_stat, scalar_mlp_hidden_dim)
    mlp_dim = dynamic_dim_out + scalar_mlp_hidden_dim
    w1, b1 = lin(keys[3], mlp_dim, ensemble_mlp_hidden_dim)
    w2, b2 = lin(keys[4], ensemble_mlp_hidden_dim, output_dim)
    return {"wd1": wd1, "bd1": bd1, "wd2": wd2, "bd2": bd2,
            "ws": ws, "bs": bs, "w1": w1, "b1": b1, "w2": w2, "b2": b2}


if __name__ == "__main__":
    B, T, F_DYN, F_STAT = 16, 8, 16, 8
    DYN_HIDDEN, DYNAMIC_DIM_OUT = 32, 32
    SCALAR_MLP_HIDDEN_DIM, ENSEMBLE_MLP_HIDDEN_DIM, OUTPUT_DIM = 32, 64, 4

    root = jax.random.PRNGKey(0)
    k_dyn, k_mask, k_stat, k_params = jax.random.split(root, 4)

    dynamic_features = jax.random.normal(k_dyn, (B, T, F_DYN), jnp.float32)
    missingness_mask = (jax.random.uniform(k_mask, (B, T, F_DYN)) > 0.3).astype(jnp.float32)
    static_features = jax.random.normal(k_stat, (B, F_STAT), jnp.float32)

    params = init_params(
        k_params, F_DYN, F_STAT, DYN_HIDDEN, DYNAMIC_DIM_OUT,
        SCALAR_MLP_HIDDEN_DIM, ENSEMBLE_MLP_HIDDEN_DIM, OUTPUT_DIM,
    )

    # batch_tile=8 with B=16 -> grid=(2,), so the batched pipeline is actually exercised.
    out = ensemble_forward(dynamic_features, missingness_mask, static_features, params,
                           batch_tile=8)
    out = jax.block_until_ready(out)

    ref = ensemble_reference(dynamic_features, missingness_mask, static_features, params)
    assert out.shape == (B, OUTPUT_DIM)
    assert jnp.allclose(out, ref, atol=1e-4, rtol=1e-4), "mismatch vs JAX reference"

    # TODO(synk): batch_norm=True branch (nn.BatchNorm1d) not implemented; use_bn=False path only.
    print("KERNEL_OK")
</pallas_src>

<mosaic_0001>
module attributes {stable_mosaic.version = 11 : i64} {
  func.func @kernel(%arg0: i32, %arg1: memref<8x8x16xf32, #tpu.memory_space<vmem>>, %arg2: memref<8x8x16xf32, #tpu.memory_space<vmem>>, %arg3: memref<8x8xf32, #tpu.memory_space<vmem>>, %arg4: memref<216x128xf32, #tpu.memory_space<vmem>>, %arg5: memref<8x128xf32, #tpu.memory_space<vmem>>) attributes {dimension_semantics = [#tpu.dimension_semantics<parallel>], iteration_bounds = array<i64: 2>, scalar_prefetch = 0 : i64, scratch_operands = 0 : i64, tpu.core_type = #tpu.core_type<tc>, window_params = [{transform_indices = @transform_0, window_bounds = array<i64: 8, 8, 16>}, {transform_indices = @transform_1, window_bounds = array<i64: 8, 8, 16>}, {transform_indices = @transform_2, window_bounds = array<i64: 8, 8>}, {pipeline_mode = #tpu.pipeline_mode<synchronous>, transform_indices = @transform_3, window_bounds = array<i64: 216, 128>}, {transform_indices = @transform_4, window_bounds = array<i64: 8, 128>}]} {
    %c0 = arith.constant 0 : index
    %c0_0 = arith.constant 0 : index
    %c0_1 = arith.constant 0 : index
    %0 = vector.load %arg1[%c0, %c0_0, %c0_1] : memref<8x8x16xf32, #tpu.memory_space<vmem>>, vector<8x8x16xf32>
    %c0_2 = arith.constant 0 : index
    %c0_3 = arith.constant 0 : index
    %c0_4 = arith.constant 0 : index
    %1 = vector.load %arg2[%c0_2, %c0_3, %c0_4] : memref<8x8x16xf32, #tpu.memory_space<vmem>>, vector<8x8x16xf32>
    %c0_5 = arith.constant 0 : index
    %c0_6 = arith.constant 0 : index
    %2 = vector.load %arg3[%c0_5, %c0_6] : memref<8x8xf32, #tpu.memory_space<vmem>>, vector<8x8xf32>
    %3 = arith.mulf %0, %1 : vector<8x8x16xf32>
    %cst = arith.constant dense<0.000000e+00> : vector<8x16xf32>
    %4 = vector.multi_reduction <add>, %3, %cst [1] : vector<8x8x16xf32> to vector<8x16xf32>
    %cst_7 = arith.constant dense<0.000000e+00> : vector<8x16xf32>
    %5 = vector.multi_reduction <add>, %1, %cst_7 [1] : vector<8x8x16xf32> to vector<8x16xf32>
    %cst_8 = arith.constant 1.000000e+00 : f32
    %6 = vector.broadcast %cst_8 : f32 to vector<8x16xf32>
    %7 = arith.maximumf %5, %6 : vector<8x16xf32>
    %8 = tpu.reciprocal %7 : vector<8x16xf32> -> vector<8x16xf32>
    %9 = arith.mulf %4, %8 : vector<8x16xf32>
    %10 = tpu.concatenate %9, %2 in 1 : vector<8x16xf32>, vector<8x8xf32> -> vector<8x24xf32>
    %c0_9 = arith.constant 0 : index
    %c0_10 = arith.constant 0 : index
    %11 = vector.load %arg4[%c0_9, %c0_10] : memref<216x128xf32, #tpu.memory_space<vmem>>, vector<24x64xf32>
    %c184 = arith.constant 184 : index
    %c0_11 = arith.constant 0 : index
    %12 = vector.load %arg4[%c184, %c0_11] : memref<216x128xf32, #tpu.memory_space<vmem>>, vector<1x64xf32>
    %cst_12 = arith.constant dense<0.000000e+00> : vector<8x64xf32>
    %13 = tpu.matmul %10, %11, %cst_12 {dimension_numbers = #tpu.dot_dimension_numbers<[1], [0], [0], [1], [0, 0, 1, 1], [], []>} : vector<8x24xf32>, vector<24x64xf32>, vector<8x64xf32> -> vector<8x64xf32>
    %14 = vector.broadcast %12 : vector<1x64xf32> to vector<8x64xf32>
    %15 = arith.addf %13, %14 : vector<8x64xf32>
    %cst_13 = arith.constant 0.000000e+00 : f32
    %16 = vector.broadcast %cst_13 : f32 to vector<8x64xf32>
    %17 = arith.maximumf %15, %16 : vector<8x64xf32>
    %18 = vector.extract_strided_slice %17 {offsets = [0, 0], sizes = [8, 32], strides = [1, 1]} : vector<8x64xf32> to vector<8x32xf32>
    %19 = vector.extract_strided_slice %17 {offsets = [0, 32], sizes = [8, 32], strides = [1, 1]} : vector<8x64xf32> to vector<8x32xf32>
    %c24 = arith.constant 24 : index
    %c0_14 = arith.constant 0 : index
    %20 = vector.load %arg4[%c24, %c0_14] : memref<216x128xf32, #tpu.memory_space<vmem>>, vector<32x32xf32>
    %c192 = arith.constant 192 : index
    %c0_15 = arith.constant 0 : index
    %21 = vector.load %arg4[%c192, %c0_15] : memref<216x128xf32, #tpu.memory_space<vmem>>, vector<1x32xf32>
    %cst_16 = arith.constant dense<0.000000e+00> : vector<8x32xf32>
    %22 = tpu.matmul %18, %20, %cst_16 {dimension_numbers = #tpu.dot_dimension_numbers<[1], [0], [0], [1], [0, 0, 1, 1], [], []>} : vector<8x32xf32>, vector<32x32xf32>, vector<8x32xf32> -> vector<8x32xf32>
    %23 = vector.broadcast %21 : vector<1x32xf32> to vector<8x32xf32>
    %24 = arith.addf %22, %23 : vector<8x32xf32>
    %25 = tpu.concatenate %19, %24 in 1 : vector<8x32xf32>, vector<8x32xf32> -> vector<8x64xf32>
    %c56 = arith.constant 56 : index
    %c0_17 = arith.constant 0 : index
    %26 = vector.load %arg4[%c56, %c0_17] : memref<216x128xf32, #tpu.memory_space<vmem>>, vector<64x64xf32>
    %c200 = arith.constant 200 : index
    %c0_18 = arith.constant 0 : index
    %27 = vector.load %arg4[%c200, %c0_18] : memref<216x128xf32, #tpu.memory_space<vmem>>, vector<1x64xf32>
    %cst_19 = arith.constant dense<0.000000e+00> : vector<8x64xf32>
    %28 = tpu.matmul %25, %26, %cst_19 {dimension_numbers = #tpu.dot_dimension_numbers<[1], [0], [0], [1], [0, 0, 1, 1], [], []>} : vector<8x64xf32>, vector<64x64xf32>, vector<8x64xf32> -> vector<8x64xf32>
    %29 = vector.broadcast %27 : vector<1x64xf32> to vector<8x64xf32>
    %30 = arith.addf %28, %29 : vector<8x64xf32>
    %cst_20 = arith.constant 0.000000e+00 : f32
    %31 = vector.broadcast %cst_20 : f32 to vector<8x64xf32>
    %32 = arith.maximumf %30, %31 : vector<8x64xf32>
    %c120 = arith.constant 120 : index
    %c0_21 = arith.constant 0 : index
    %33 = vector.load %arg4[%c120, %c0_21] : memref<216x128xf32, #tpu.memory_space<vmem>>, vector<64x128xf32>
    %c208 = arith.constant 208 : index
    %c0_22 = arith.constant 0 : index
    %34 = vector.load %arg4[%c208, %c0_22] : memref<216x128xf32, #tpu.memory_space<vmem>>, vector<1x128xf32>
    %cst_23 = arith.constant dense<0.000000e+00> : vector<8x128xf32>
    %35 = tpu.matmul %32, %33, %cst_23 {dimension_numbers = #tpu.dot_dimension_numbers<[1], [0], [0], [1], [0, 0, 1, 1], [], []>} : vector<8x64xf32>, vector<64x128xf32>, vector<8x128xf32> -> vector<8x128xf32>
    %36 = vector.broadcast %34 : vector<1x128xf32> to vector<8x128xf32>
    %37 = arith.addf %35, %36 : vector<8x128xf32>
    %c0_24 = arith.constant 0 : index
    %c0_25 = arith.constant 0 : index
    %38 = vector.load %arg5[%c0_24, %c0_25] : memref<8x128xf32, #tpu.memory_space<vmem>>, vector<8x128xf32>
    tpu.vector_store %arg5[%c0_24, %c0_25], %37 {strides = array<i32>} : memref<8x128xf32, #tpu.memory_space<vmem>>, vector<8x128xf32>,
    return
  }
  func.func @transform_0(%arg0: i32) -> (i32, i32, i32) {
    %c0_i32 = arith.constant 0 : i32
    %c0_i32_0 = arith.constant 0 : i32
    %c0_i32_1 = arith.constant 0 : i32
    return %arg0, %c0_i32, %c0_i32_0 : i32, i32, i32
  }
  func.func @transform_1(%arg0: i32) -> (i32, i32, i32) {
    %c0_i32 = arith.constant 0 : i32
    %c0_i32_0 = arith.constant 0 : i32
    %c0_i32_1 = arith.constant 0 : i32
    return %arg0, %c0_i32, %c0_i32_0 : i32, i32, i32
  }
  func.func @transform_2(%arg0: i32) -> (i32, i32) {
    %c0_i32 = arith.constant 0 : i32
    %c0_i32_0 = arith.constant 0 : i32
    return %arg0, %c0_i32 : i32, i32
  }
  func.func @transform_3(%arg0: i32) -> (i32, i32) {
    %c0_i32 = arith.constant 0 : i32
    %c0_i32_0 = arith.constant 0 : i32
    %c0_i32_1 = arith.constant 0 : i32
    return %c0_i32, %c0_i32_0 : i32, i32
  }
  func.func @transform_4(%arg0: i32) -> (i32, i32) {
    %c0_i32 = arith.constant 0 : i32
    %c0_i32_0 = arith.constant 0 : i32
    return %arg0, %c0_i32 : i32, i32
  }
}

</mosaic_0001>

<llo_original>
// kernel: tpu_custom_call.1
$region0: #{tpu_custom_call.1}
  #allocation0 [shape = 'u32[]', space=smem, size = 0x4, offset = 0x4, fixed_abs, tag = 'smem constant byte address 0x4 - core index']
  #allocation1 [shape = 'u32[144,128]{1,0:T(1,128)}', space=vmem, size = 0x12000, scoped, tag = 'internal scratch']
  %s0 = inlined_call_operand.hbm [shape: f32[16,8,16], index: 0, kind: input, shape index: {}]
  %s1 = inlined_call_operand.hbm [shape: f32[16,8,16], index: 1, kind: input, shape index: {}]
  %s2 = inlined_call_operand.vmem [shape: f32[16,8], index: 2, kind: input, shape index: {}]
  %s3 = inlined_call_operand.hbm [shape: f32[216,128], index: 3, kind: input, shape index: {}]
  %s4 = inlined_call_operand.hbm [shape: f32[16,128], index: 4, kind: output, shape index: {}]
  %s5 = sld [smem:[#allocation0]]
  $region61: #{tpu_custom_call.1} parent=0
    _
  %s7 = ssub.s32 1, %s5
  %s8 = scalar_select 0, %s7, %s5
  $region1: #{tpu_custom_call.1} parent=0
    #allocation2 [shape = 'u8[65536]{0}', space=vmem, size = 0x10000, scoped, tag = 'input window, operand 0']
    #allocation3 [shape = 's32[2]{0}', space=sflag, size = 0x8, scoped, tag = 'scoped memory for tpu_custom_call.1']
    #allocation4 [shape = 's32[2]{0}', space=sflag, size = 0x8, scoped, tag = 'scoped memory for tpu_custom_call.1']
    #allocation5 [shape = 'u8[65536]{0}', space=vmem, size = 0x10000, scoped, tag = 'input window, operand 1']
    #allocation6 [shape = 's32[2]{0}', space=sflag, size = 0x8, scoped, tag = 'scoped memory for tpu_custom_call.1']
    #allocation7 [shape = 'u8[110592]{0}', space=vmem, size = 0x1b000, scoped, tag = 'input window, operand 3, single buffered']
    #allocation8 [shape = 'u8[8192]{0}', space=vmem, size = 0x2000, scoped, tag = 'output window, operand 0']
    %9 = vsyncpa [#allocation3], 0
    %s10 = scalar_lea.sflag [#allocation3], 1
    %11 = vsyncpa %s10, 0
    %12 = vsyncpa [#allocation6], 0
    %s13 = scalar_lea.sflag [#allocation6], 1
    %14 = vsyncpa %s13, 0
    %15 = vsyncpa [#allocation4], 0
    %s16 = scalar_lea.sflag [#allocation4], 1
    %17 = vsyncpa %s16, 0
    loop: start=0, step=1, limit=4
    $region2: #{tpu_custom_call.1} parent=1 // loop_pre_header
      _
    $region3: #{tpu_custom_call.1} parent=1 // loop_header
      %s19 = sphi 0, %s23
      %p20 = scmp.ge.s32.totalorder %s19, 4
      %s29 = sphi 0, %s31
      %s32 = sphi 0, %s29
      %s33 = sphi 0, %s32
      %s49 = sphi 0, %s33
      %s55 = sphi 0, %s57
      %s58 = sphi 0, %s55
      %s59 = sphi 0, %s58
      %s75 = sphi 0, %s59
      %s81 = sphi 0, %s83
      %s84 = sphi 0, %s81
      %s85 = sphi 0, %s84
      %s101 = sphi 0, %s85
      %s105 = sphi 0, %s105
      %s107 = sphi 0, %s105
      %s108 = sphi 0, %s107
      %s122 = sphi 0, %s108
      %s128 = sphi 0, %s130
      %s131 = sphi 0, %s128
      %s132 = sphi 0, %s131
      %s148 = sphi 0, %s132
    $region4: #{tpu_custom_call.1} parent=1 // loop_header_branch
      %22 = sbr.rel (%p20) target = $region8
    $region5: #{tpu_custom_call.1} parent=1 // loop_body
      %s24 = ssub.s32 %s19, 1
      %s25 = ssub.s32 %s19, 2
      %s26 = sadd.s32 %s19, 1
      %s27 = ssub.s32 %s19, %s26
      %p28 = scmp.eq.s32.totalorder %s27, 0
      %s30 = sadd.s32 %s29, 1
      %s31 = scalar_select %p28, %s29, %s30
      %p34 = pneg %p28
      %p35 = scmp.eq.s32.totalorder %s19, 1
      %p36 = por %p34, %p35
      %p37 = scmp.ne.s32.totalorder %s29, %s32
      %p38 = scmp.eq.s32.totalorder %s19, 0
      %p39 = por %p37, %p38
      %p40 = scmp.ne.s32.totalorder %s29, %s32
      %p41 = scmp.eq.s32.totalorder %s24, 1
      %p42 = por %p40, %p41
      %p43 = scmp.ne.s32.totalorder %s32, %s33
      %p44 = scmp.eq.s32.totalorder %s24, 0
      %p45 = por %p43, %p44
      %p46 = scmp.ne.s32.totalorder %s32, %s33
      %p47 = scmp.eq.s32.totalorder %s25, 1
      %p48 = por %p46, %p47
      %p50 = scmp.ne.s32.totalorder %s33, %s49
      %p51 = scmp.eq.s32.totalorder %s25, 0
      %p52 = por %p50, %p51
      %s53 = ssub.s32 %s19, %s26
      %p54 = scmp.eq.s32.totalorder %s53, 0
      %s56 = sadd.s32 %s55, 1
      %s57 = scalar_select %p54, %s55, %s56
      %p60 = pneg %p54
      %p61 = scmp.eq.s32.totalorder %s19, 1
      %p62 = por %p60, %p61
      %p63 = scmp.ne.s32.totalorder %s55, %s58
      %p64 = scmp.eq.s32.totalorder %s19, 0
      %p65 = por %p63, %p64
      %p66 = scmp.ne.s32.totalorder %s55, %s58
      %p67 = scmp.eq.s32.totalorder %s24, 1
      %p68 = por %p66, %p67
      %p69 = scmp.ne.s32.totalorder %s58, %s59
      %p70 = scmp.eq.s32.totalorder %s24, 0
      %p71 = por %p69, %p70
      %p72 = scmp.ne.s32.totalorder %s58, %s59
      %p73 = scmp.eq.s32.totalorder %s25, 1
      %p74 = por %p72, %p73
      %p76 = scmp.ne.s32.totalorder %s59, %s75
      %p77 = scmp.eq.s32.totalorder %s25, 0
      %p78 = por %p76, %p77
      %s79 = ssub.s32 %s19, %s26
      %p80 = scmp.eq.s32.totalorder %s79, 0
      %s82 = sadd.s32 %s81, 1
      %s83 = scalar_select %p80, %s81, %s82
      %p86 = pneg %p80
      %p87 = scmp.eq.s32.totalorder %s19, 1
      %p88 = por %p86, %p87
      %p89 = scmp.ne.s32.totalorder %s81, %s84
      %p90 = scmp.eq.s32.totalorder %s19, 0
      %p91 = por %p89, %p90
      %p92 = scmp.ne.s32.totalorder %s81, %s84
      %p93 = scmp.eq.s32.totalorder %s24, 1
      %p94 = por %p92, %p93
      %p95 = scmp.ne.s32.totalorder %s84, %s85
      %p96 = scmp.eq.s32.totalorder %s24, 0
      %p97 = por %p95, %p96
      %p98 = scmp.ne.s32.totalorder %s84, %s85
      %p99 = scmp.eq.s32.totalorder %s25, 1
      %p100 = por %p98, %p99
      %p102 = scmp.ne.s32.totalorder %s85, %s101
      %p103 = scmp.eq.s32.totalorder %s25, 0
      %p104 = por %p102, %p103
      %s106 = sadd.s32 %s105, 1
      %p109 = scmp.eq.s32.totalorder %s19, 1
      %p110 = scmp.ne.s32.totalorder %s105, %s107
      %p111 = scmp.eq.s32.totalorder %s19, 0
      %p112 = por %p110, %p111
      %p113 = scmp.ne.s32.totalorder %s105, %s107
      %p114 = scmp.eq.s32.totalorder %s24, 1
      %p115 = por %p113, %p114
      %p116 = scmp.ne.s32.totalorder %s107, %s108
      %p117 = scmp.eq.s32.totalorder %s24, 0
      %p118 = por %p116, %p117
      %p119 = scmp.ne.s32.totalorder %s107, %s108
      %p120 = scmp.eq.s32.totalorder %s25, 1
      %p121 = por %p119, %p120
      %p123 = scmp.ne.s32.totalorder %s108, %s122
      %p124 = scmp.eq.s32.totalorder %s25, 0
      %p125 = por %p123, %p124
      %s126 = ssub.s32 %s19, %s26
      %p127 = scmp.eq.s32.totalorder %s126, 0
      %s129 = sadd.s32 %s128, 1
      %s130 = scalar_select %p127, %s128, %s129
      %p133 = pneg %p127
      %p134 = scmp.eq.s32.totalorder %s19, 1
      %p135 = por %p133, %p134
      %p136 = scmp.ne.s32.totalorder %s128, %s131
      %p137 = scmp.eq.s32.totalorder %s19, 0
      %p138 = por %p136, %p137
      %p139 = scmp.ne.s32.totalorder %s128, %s131
      %p140 = scmp.eq.s32.totalorder %s24, 1
      %p141 = por %p139, %p140
      %p142 = scmp.ne.s32.totalorder %s131, %s132
      %p143 = scmp.eq.s32.totalorder %s24, 0
      %p144 = por %p142, %p143
      %p145 = scmp.ne.s32.totalorder %s131, %s132
      %p146 = scmp.eq.s32.totalorder %s25, 1
      %p147 = por %p145, %p146
      %p149 = scmp.ne.s32.totalorder %s132, %s148
      %p150 = scmp.eq.s32.totalorder %s25, 0
      %p151 = por %p149, %p150
      %p152 = scmp.le.s32.totalorder 1, %s19
      %p153 = scmp.lt.s32.totalorder %s19, 3
      %p154 = pnand %p152, %p153
      %p155 = pneg %p154
      // Predicated region
      $region9: #{tpu_custom_call.1} parent=5 // pred_check
        _
      $region10: #{tpu_custom_call.1} parent=5 // pred_check_branch
        %157 = sbr.rel (%p154) target = $region12
      $region11: #{tpu_custom_call.1} parent=5 // pred_region
        %s158 = ssub.s32 %s19, 1
        // Predicated region
        $region13: #{tpu_custom_call.1} parent=11 // pred_check
          %p159 = pneg %p118
        $region14: #{tpu_custom_call.1} parent=11 // pred_check_branch
          %161 = sbr.rel (%p159) target = $region16
        $region15: #{tpu_custom_call.1} parent=11 // pred_region
          %s163 = ssub.s32 3456, 3456
          %164 = vsyncadd [#allocation6], %s163
          %s165 = sshll.u32 [#allocation7], 4
          %s166 = int_to_ptr.vmem [resolvable:$true] %s165
          %171 = dma.hbm_to_vmem [thread:$0]  %s3, 3456, %s166, [#allocation6], 128, 128, 8
        $region16: #{tpu_custom_call.1} parent=11 // pred_fallthru
          _
      $region12: #{tpu_custom_call.1} parent=5 // pred_fallthru
        _
      %p172 = scmp.lt.s32.totalorder %s19, 2
      // Predicated region
      $region17: #{tpu_custom_call.1} parent=5 // pred_check
        %p173 = pneg %p172
      $region18: #{tpu_custom_call.1} parent=5 // pred_check_branch
        %175 = sbr.rel (%p173) target = $region20
      $region19: #{tpu_custom_call.1} parent=5 // pred_region
        // Predicated region
        $region21: #{tpu_custom_call.1} parent=19 // pred_check
          %p176 = pneg %p39
        $region22: #{tpu_custom_call.1} parent=19 // pred_check_branch
          %178 = sbr.rel (%p176) target = $region24
        $region23: #{tpu_custom_call.1} parent=19 // pred_region
          %s179 = sand.u32 %s29, 1
          %s180 = scalar_lea.sflag [#allocation3], %s179
          %s181 = sand.u32 %s29, 1
          %s182 = smul.addr %s181, 64
          %s183 = scalar_lea.vmem [#allocation2], %s182
          %s184 = smul.u32 8, %s19
          %s186 = ssub.s32 1024, 1024
          %187 = vsyncadd %s180, %s186
          %s188 = smul.addr %s184, 128
          %s189 = scalar_lea.hbm %s0, %s188
          %s190 = sshll.u32 %s183, 4
          %s191 = int_to_ptr.vmem [resolvable:$true] %s190
          %196 = dma.hbm_to_vmem [thread:$0]  %s189, 1024, %s191, %s180, 128, 128, 8
        $region24: #{tpu_custom_call.1} parent=19 // pred_fallthru
          _
        // Predicated region
        $region25: #{tpu_custom_call.1} parent=19 // pred_check
          %p197 = pneg %p65
        $region26: #{tpu_custom_call.1} parent=19 // pred_check_branch
          %199 = sbr.rel (%p197) target = $region28
        $region27: #{tpu_custom_call.1} parent=19 // pred_region
          %s200 = sand.u32 %s19, 1
          %s201 = scalar_lea.sflag [#allocation6], %s200
          %s202 = sand.u32 %s55, 1
          %s203 = smul.addr %s202, 64
          %s204 = scalar_lea.vmem [#allocation5], %s203
          %s205 = smul.u32 8, %s19
          %s207 = ssub.s32 1024, 1024
          %208 = vsyncadd %s201, %s207
          %s209 = smul.addr %s205, 128
          %s210 = scalar_lea.hbm %s1, %s209
          %s211 = sshll.u32 %s204, 4
          %s212 = int_to_ptr.vmem [resolvable:$true] %s211
          %217 = dma.hbm_to_vmem [thread:$0]  %s210, 1024, %s212, %s201, 128, 128, 8
        $region28: #{tpu_custom_call.1} parent=19 // pred_fallthru
          _
        // Predicated region
        $region29: #{tpu_custom_call.1} parent=19 // pred_check
          %p218 = pneg %p91
        $region30: #{tpu_custom_call.1} parent=19 // pred_check_branch
          %220 = sbr.rel (%p218) target = $region32
        $region31: #{tpu_custom_call.1} parent=19 // pred_region
          %p221 = scmp.lt.s32.totalorder %s19, 1
          %s222 = scalar_select %p221, %s19, 1
          %s223 = smul.addr %s222, 8
          %s224 = scalar_lea.vmem %s2, %s223
        $region32: #{tpu_custom_call.1} parent=19 // pred_fallthru
          _
      $region20: #{tpu_custom_call.1} parent=5 // pred_fallthru
        _
      %p225 = scmp.le.s32.totalorder 1, %s19
      %p226 = scmp.lt.s32.totalorder %s19, 3
      %p227 = pnand %p225, %p226
      %p228 = pneg %p227
      // Predicated region
      $region33: #{tpu_custom_call.1} parent=5 // pred_check
        _
      $region34: #{tpu_custom_call.1} parent=5 // pred_check_branch
        %230 = sbr.rel (%p227) target = $region36
      $region35: #{tpu_custom_call.1} parent=5 // pred_region
        %s231 = ssub.s32 %s19, 1
        %s232 = sand.u32 %s32, 1
        %s233 = scalar_lea.sflag [#allocation3], %s232
        %s234 = sand.u32 %s32, 1
        %s235 = smul.addr %s234, 64
        %s236 = scalar_lea.vmem [#allocation2], %s235
        // Predicated region
        $region37: #{tpu_custom_call.1} parent=35 // pred_check
          %p237 = pneg %p45
        $region38: #{tpu_custom_call.1} parent=35 // pred_check_branch
          %239 = sbr.rel (%p237) target = $region40
        $region39: #{tpu_custom_call.1} parent=35 // pred_region
          %240 = dma.done %s233, 1024
        $region40: #{tpu_custom_call.1} parent=35 // pred_fallthru
          _
        %s241 = sand.u32 %s24, 1
        %s242 = scalar_lea.sflag [#allocation6], %s241
        %s243 = sand.u32 %s58, 1
        %s244 = smul.addr %s243, 64
        %s245 = scalar_lea.vmem [#allocation5], %s244
        // Predicated region
        $region41: #{tpu_custom_call.1} parent=35 // pred_check
          %p246 = pneg %p71
        $region42: #{tpu_custom_call.1} parent=35 // pred_check_branch
          %248 = sbr.rel (%p246) target = $region44
        $region43: #{tpu_custom_call.1} parent=35 // pred_region
          %249 = dma.done %s242, 1024
        $region44: #{tpu_custom_call.1} parent=35 // pred_fallthru
          _
        // Predicated region
        $region45: #{tpu_custom_call.1} parent=35 // pred_check
          %p250 = pneg %p118
        $region46: #{tpu_custom_call.1} parent=35 // pred_check_branch
          %252 = sbr.rel (%p250) target = $region48
        $region47: #{tpu_custom_call.1} parent=35 // pred_region
          %253 = dma.done [#allocation6], 3456
        $region48: #{tpu_custom_call.1} parent=35 // pred_fallthru
          _
        %s254 = sand.u32 %s32, 1
        %s255 = scalar_lea.sflag [#allocation3], %s254
        %s256 = sand.u32 %s32, 1
        %s257 = smul.addr %s256, 64
        %s258 = scalar_lea.vmem [#allocation2], %s257
        %p259 = pneg %p45
        %p260 = pneg %p42
        %s261 = sand.u32 %s24, 1
        %s262 = scalar_lea.sflag [#allocation6], %s261
        %s263 = sand.u32 %s58, 1
        %s264 = smul.addr %s263, 64
        %s265 = scalar_lea.vmem [#allocation5], %s264
        %p266 = pneg %p71
        %p267 = pneg %p68
        %p268 = scmp.lt.s32.totalorder %s24, 1
        %s269 = scalar_select %p268, %s24, 1
        %s270 = smul.addr %s269, 8
        %s271 = scalar_lea.vmem %s2, %s270
        %p272 = pneg %p97
        %p273 = pneg %p94
        %p274 = pneg %p118
        %p275 = pneg %p115
        %p276 = pneg %p144
        %p277 = pneg %p141
        %s278 = sand.u32 %s131, 1
        %s279 = scalar_lea.sflag [#allocation4], %s278
        %s280 = sand.u32 %s131, 1
        %s281 = smul.addr %s280, 8
        %s282 = scalar_lea.vmem [#allocation8], %s281
        %s283 = smul.u32 8, %s24
        %s284 = smul.u32 8, %s24
        %p285 = scmp.lt.s32.totalorder %s24, 1
        %s286 = scalar_select %p285, %s24, 1
        %s287 = smul.addr %s286, 8
        %s288 = scalar_lea.vmem %s2, %s287
        %v289 = vld [vmem:[%s236] sm:$0xff]
        %v290 = vld [vmem:[%s236 + $0x8] sm:$0xff]
        %v291 = vld [vmem:[%s236 + $0x10] sm:$0xff]
        %v292 = vld [vmem:[%s236 + $0x18] sm:$0xff]
        %v293 = vld [vmem:[%s236 + $0x20] sm:$0xff]
        %v294 = vld [vmem:[%s236 + $0x28] sm:$0xff]
        %v295 = vld [vmem:[%s236 + $0x30] sm:$0xff]
        %v296 = vld [vmem:[%s236 + $0x38] sm:$0xff]
        %v297 = vld [vmem:[%s245] sm:$0xff]
        %v298 = vld [vmem:[%s245 + $0x8] sm:$0xff]
        %v299 = vld [vmem:[%s245 + $0x10] sm:$0xff]
        %v300 = vld [vmem:[%s245 + $0x18] sm:$0xff]
        %v301 = vld [vmem:[%s245 + $0x20] sm:$0xff]
        %v302 = vld [vmem:[%s245 + $0x28] sm:$0xff]
        %v303 = vld [vmem:[%s245 + $0x30] sm:$0xff]
        %v304 = vld [vmem:[%s245 + $0x38] sm:$0xff]
        %v305 = vld [vmem:[%s288] sm:$0xff]
        %v306 = vmul.f32 %v289, %v297
        %v307 = vmul.f32 %v290, %v298
        %v308 = vmul.f32 %v291, %v299
        %v309 = vmul.f32 %v292, %v300
        %v310 = vmul.f32 %v293, %v301
        %v311 = vmul.f32 %v294, %v302
        %v312 = vmul.f32 %v295, %v303
        %v313 = vmul.f32 %v296, %v304
        %vm314 = vcmask 130048
        %v315 = vsel %vm314, %v306, 0.0
        %v316 = vrot.slane %v315, 4
        %v317 = vadd.f32 %v315, %v316
        %v318 = vrot.slane %v317, 2
        %v319 = vadd.f32 %v317, %v318
        %v320 = vrot.slane %v319, 1
        %v321 = vadd.f32 %v319, %v320
        %v322 = vsel %vm314, %v307, 0.0
        %v323 = vrot.slane %v322, 4
        %v324 = vadd.f32 %v322, %v323
        %v325 = vrot.slane %v324, 2
        %v326 = vadd.f32 %v324, %v325
        %v327 = vrot.slane %v326, 1
        %v328 = vadd.f32 %v326, %v327
        %v329 = vsel %vm314, %v308, 0.0
        %v330 = vrot.slane %v329, 4
        %v331 = vadd.f32 %v329, %v330
        %v332 = vrot.slane %v331, 2
        %v333 = vadd.f32 %v331, %v332
        %v334 = vrot.slane %v333, 1
        %v335 = vadd.f32 %v333, %v334
        %v336 = vsel %vm314, %v309, 0.0
        %v337 = vrot.slane %v336, 4
        %v338 = vadd.f32 %v336, %v337
        %v339 = vrot.slane %v338, 2
        %v340 = vadd.f32 %v338, %v339
        %v341 = vrot.slane %v340, 1
        %v342 = vadd.f32 %v340, %v341
        %v343 = vsel %vm314, %v310, 0.0
        %v344 = vrot.slane %v343, 4
        %v345 = vadd.f32 %v343, %v344
        %v346 = vrot.slane %v345, 2
        %v347 = vadd.f32 %v345, %v346
        %v348 = vrot.slane %v347, 1
        %v349 = vadd.f32 %v347, %v348
        %v350 = vsel %vm314, %v311, 0.0
        %v351 = vrot.slane %v350, 4
        %v352 = vadd.f32 %v350, %v351
        %v353 = vrot.slane %v352, 2
        %v354 = vadd.f32 %v352, %v353
        %v355 = vrot.slane %v354, 1
        %v356 = vadd.f32 %v354, %v355
        %v357 = vsel %vm314, %v312, 0.0
        %v358 = vrot.slane %v357, 4
        %v359 = vadd.f32 %v357, %v358
        %v360 = vrot.slane %v359, 2
        %v361 = vadd.f32 %v359, %v360
        %v362 = vrot.slane %v361, 1
        %v363 = vadd.f32 %v361, %v362
        %v364 = vsel %vm314, %v313, 0.0
        %v365 = vrot.slane %v364, 4
        %v366 = vadd.f32 %v364, %v365
        %v367 = vrot.slane %v366, 2
        %v368 = vadd.f32 %v366, %v367
        %v369 = vrot.slane %v368, 1
        %v370 = vadd.f32 %v368, %v369
        %v371 = vsel %vm314, %v297, 0.0
        %v372 = vrot.slane %v371, 4
        %v373 = vadd.f32 %v371, %v372
        %v374 = vrot.slane %v373, 2
        %v375 = vadd.f32 %v373, %v374
        %v376 = vrot.slane %v375, 1
        %v377 = vadd.f32 %v375, %v376
        %v378 = vsel %vm314, %v298, 0.0
        %v379 = vrot.slane %v378, 4
        %v380 = vadd.f32 %v378, %v379
        %v381 = vrot.slane %v380, 2
        %v382 = vadd.f32 %v380, %v381
        %v383 = vrot.slane %v382, 1
        %v384 = vadd.f32 %v382, %v383
        %v385 = vsel %vm314, %v299, 0.0
        %v386 = vrot.slane %v385, 4
        %v387 = vadd.f32 %v385, %v386
        %v388 = vrot.slane %v387, 2
        %v389 = vadd.f32 %v387, %v388
        %v390 = vrot.slane %v389, 1
        %v391 = vadd.f32 %v389, %v390
        %v392 = vsel %vm314, %v300, 0.0
        %v393 = vrot.slane %v392, 4
        %v394 = vadd.f32 %v392, %v393
        %v395 = vrot.slane %v394, 2
        %v396 = vadd.f32 %v394, %v395
        %v397 = vrot.slane %v396, 1
        %v398 = vadd.f32 %v396, %v397
        %v399 = vsel %vm314, %v301, 0.0
        %v400 = vrot.slane %v399, 4
        %v401 = vadd.f32 %v399, %v400
        %v402 = vrot.slane %v401, 2
        %v403 = vadd.f32 %v401, %v402
        %v404 = vrot.slane %v403, 1
        %v405 = vadd.f32 %v403, %v404
        %v406 = vsel %vm314, %v302, 0.0
        %v407 = vrot.slane %v406, 4
        %v408 = vadd.f32 %v406, %v407
        %v409 = vrot.slane %v408, 2
        %v410 = vadd.f32 %v408, %v409
        %v411 = vrot.slane %v410, 1
        %v412 = vadd.f32 %v410, %v411
        %v413 = vsel %vm314, %v303, 0.0
        %v414 = vrot.slane %v413, 4
        %v415 = vadd.f32 %v413, %v414
        %v416 = vrot.slane %v415, 2
        %v417 = vadd.f32 %v415, %v416
        %v418 = vrot.slane %v417, 1
        %v419 = vadd.f32 %v417, %v418
        %v420 = vsel %vm314, %v304, 0.0
        %v421 = vrot.slane %v420, 4
        %v422 = vadd.f32 %v420, %v421
        %v423 = vrot.slane %v422, 2
        %v424 = vadd.f32 %v422, %v423
        %v425 = vrot.slane %v424, 1
        %v426 = vadd.f32 %v424, %v425
        %v427 = vmax.f32 %v377, 1.0
        %v428 = vmax.f32 %v384, 1.0
        %v429 = vmax.f32 %v391, 1.0
        %v430 = vmax.f32 %v398, 1.0
        %v431 = vmax.f32 %v405, 1.0
        %v432 = vmax.f32 %v412, 1.0
        %v433 = vmax.f32 %v419, 1.0
        %v434 = vmax.f32 %v426, 1.0
        %v435 = vrcp.pop %v427
        %v436 = vrcp.pop %v428
        %v437 = vrcp.pop %v429
        %v438 = vrcp.pop %v430
        %v439 = vrcp.pop %v431
        %v440 = vrcp.pop %v432
        %v441 = vrcp.pop %v433
        %v442 = vrcp.pop %v434
        %v443 = vmul.f32 %v321, %v435
        %v444 = vmul.f32 %v328, %v436
        %v445 = vmul.f32 %v335, %v437
        %v446 = vmul.f32 %v342, %v438
        %v447 = vmul.f32 %v349, %v439
        %v448 = vmul.f32 %v356, %v440
        %v449 = vmul.f32 %v363, %v441
        %v450 = vmul.f32 %v370, %v442
        %vm459 = vcmask 1041409
        %v460 = vsel %vm459, %v444, %v443
        %vm461 = vcmask 1042434
        %v462 = vsel %vm461, %v445, %v460
        %vm463 = vcmask 1043459
        %v464 = vsel %vm463, %v446, %v462
        %vm465 = vcmask 1044484
        %v466 = vsel %vm465, %v447, %v464
        %vm467 = vcmask 1045509
        %v468 = vsel %vm467, %v448, %v466
        %vm469 = vcmask 1046534
        %v470 = vsel %vm469, %v449, %v468
        %vm471 = vcmask 1047559
        %v472 = vsel %vm471, %v450, %v470
        %475 = vrot.lane.b32.xlu0 %v305, 16
        %v476 = vpop.permute.xlu0 %475
        %v478 = vsel %vm314, %v472, %v476
        %v479 = vld [vmem:[#allocation7] sm:$0xff]
        %v480 = vld [vmem:[#allocation7 + $0x8] sm:$0xff]
        %v481 = vld [vmem:[#allocation7 + $0x10] sm:$0xff]
        %v482 = vld [vmem:[#allocation7 + $0xb8] sm:$0x1]
        %v483 = vlaneseq
        %v484 = vshrl.u32 %v483, 7
        %v485 = vsub.s32 0, %v484
        %v486 = vrot.slane %v482, %v485
        %vm487 = vcmask 195584
        %v489 = vsel %vm487, %v478, 0
        %491 = vmatprep.subr.mxu0 0.0
        %492 = vmatpush1.msra.mxu0 %v479
        %493 = vmatprep.subr.mxu0 0.0
        %494 = vmatpush1.msra.mxu0 %v480
        %495 = vmatprep.subr.mxu0 0.0
        %496 = vmatpush1.msra.mxu0 %v481
        %497 = vmatprep.subr.mxu0 0.0
        %498 = vmatpush1.msra.mxu0 0.0
        %499 = vmatprep.subr.mxu0 0.0
        %500 = vmatpush1.msra.mxu0 0.0
        %501 = vmatprep.subr.mxu0 0.0
        %502 = vmatpush1.msra.mxu0 0.0
        %503 = vmatprep.subr.mxu0 0.0
        %504 = vmatpush1.msra.mxu0 0.0
        %505 = vmatprep.subr.mxu0 0.0
        %506 = vmatpush1.msra.mxu0 0.0
        %507 = vmatprep.subr.mxu0 0.0
        %508 = vmatpush1.msra.mxu0 0.0
        %509 = vmatprep.subr.mxu0 0.0
        %510 = vmatpush1.msra.mxu0 0.0
        %511 = vmatprep.subr.mxu0 0.0
        %512 = vmatpush1.msra.mxu0 0.0
        %513 = vmatprep.subr.mxu0 0.0
        %514 = vmatpush1.msra.mxu0 0.0
        %515 = vmatprep.subr.mxu0 0.0
        %516 = vmatpush1.msra.mxu0 0.0
        %517 = vmatprep.subr.mxu0 0.0
        %518 = vmatpush1.msra.mxu0 0.0
        %519 = vmatprep.subr.mxu0 0.0
        %520 = vmatpush1.msra.mxu0 0.0
        %521 = vmatprep.subr.mxu0 0.0
        %522 = vmatpush1.msra.mxu0 0.0
        %523 = vmatprep.subr.mxu0 0.0
        %524 = vmatpush1.msra.mxu0 0.0
        %525 = vmatprep.subr.mxu0 0.0
        %526 = vmatpush1.msra.mxu0 0.0
        %527 = vmatprep.subr.mxu0 0.0
        %528 = vmatpush1.msra.mxu0 0.0
        %529 = vmatprep.subr.mxu0 0.0
        %530 = vmatpush1.msra.mxu0 0.0
        %531 = vmatprep.subr.mxu0 0.0
        %532 = vmatpush1.msra.mxu0 0.0
        %533 = vmatprep.subr.mxu0 0.0
        %534 = vmatpush1.msra.mxu0 0.0
        %535 = vmatprep.subr.mxu0 0.0
        %536 = vmatpush1.msra.mxu0 0.0
        %537 = vmatprep.subr.mxu0 0.0
        %538 = vmatpush1.msra.mxu0 0.0
        %539 = vmatprep.subr.mxu0 0.0
        %540 = vmatpush1.msra.mxu0 0.0
        %541 = vmatprep.subr.mxu0 0.0
        %542 = vmatpush1.msra.mxu0 0.0
        %543 = vmatprep.subr.mxu0 0.0
        %544 = vmatpush1.msra.mxu0 0.0
        %545 = vmatprep.subr.mxu0 0.0
        %546 = vmatpush1.msra.mxu0 0.0
        %547 = vmatprep.subr.mxu0 0.0
        %548 = vmatpush1.msra.mxu0 0.0
        %549 = vmatprep.subr.mxu0 0.0
        %550 = vmatpush1.msra.mxu0 0.0
        %551 = vmatprep.subr.mxu0 0.0
        %552 = vmatpush1.msra.mxu0 0.0
        %553 = vmatprep.subr.mxu0 0.0
        %554 = vmatpush1.msra.mxu0 0.0
        %555 = vmatprep.mubr.f32.mxu0 0.0
        %556 = vmatmul.mubr.f32.gmra.mrb[0].mxu0 %v489
        %v557 = vpop.f32.mrb[0].mxu0
        %v558 = vadd.f32 %v486, %v557
        %v559 = vpop.f32.mrb[0].mxu0
        %560 = vdwg.mxu0
        %v561 = vmax.f32 %v558, 0.0
        %v562 = vld [vmem:[#allocation7 + $0x18] sm:$0xff]
        %v563 = vld [vmem:[#allocation7 + $0x20] sm:$0xff]
        %v564 = vld [vmem:[#allocation7 + $0x28] sm:$0xff]
        %v565 = vld [vmem:[#allocation7 + $0x30] sm:$0xff]
        %v566 = vld [vmem:[#allocation7 + $0xc0] sm:$0x1]
        %v567 = vlaneseq
        %v568 = vshrl.u32 %v567, 7
        %v569 = vsub.s32 0, %v568
        %v570 = vrot.slane %v566, %v569
        %vm571 = vcmask 261120
        %v573 = vsel %vm571, %v561, 0
        %575 = vmatprep.subr.mxu0 0.0
        %576 = vmatpush1.msra.mxu0 %v562
        %577 = vmatprep.subr.mxu0 0.0
        %578 = vmatpush1.msra.mxu0 %v563
        %579 = vmatprep.subr.mxu0 0.0
        %580 = vmatpush1.msra.mxu0 %v564
        %581 = vmatprep.subr.mxu0 0.0
        %582 = vmatpush1.msra.mxu0 %v565
        %583 = vmatprep.subr.mxu0 0.0
        %584 = vmatpush1.msra.mxu0 0.0
        %585 = vmatprep.subr.mxu0 0.0
        %586 = vmatpush1.msra.mxu0 0.0
        %587 = vmatprep.subr.mxu0 0.0
        %588 = vmatpush1.msra.mxu0 0.0
        %589 = vmatprep.subr.mxu0 0.0
        %590 = vmatpush1.msra.mxu0 0.0
        %591 = vmatprep.subr.mxu0 0.0
        %592 = vmatpush1.msra.mxu0 0.0
        %593 = vmatprep.subr.mxu0 0.0
        %594 = vmatpush1.msra.mxu0 0.0
        %595 = vmatprep.subr.mxu0 0.0
        %596 = vmatpush1.msra.mxu0 0.0
        %597 = vmatprep.subr.mxu0 0.0
        %598 = vmatpush1.msra.mxu0 0.0
        %599 = vmatprep.subr.mxu0 0.0
        %600 = vmatpush1.msra.mxu0 0.0
        %601 = vmatprep.subr.mxu0 0.0
        %602 = vmatpush1.msra.mxu0 0.0
        %603 = vmatprep.subr.mxu0 0.0
        %604 = vmatpush1.msra.mxu0 0.0
        %605 = vmatprep.subr.mxu0 0.0
        %606 = vmatpush1.msra.mxu0 0.0
        %607 = vmatprep.subr.mxu0 0.0
        %608 = vmatpush1.msra.mxu0 0.0
        %609 = vmatprep.subr.mxu0 0.0
        %610 = vmatpush1.msra.mxu0 0.0
        %611 = vmatprep.subr.mxu0 0.0
        %612 = vmatpush1.msra.mxu0 0.0
        %613 = vmatprep.subr.mxu0 0.0
        %614 = vmatpush1.msra.mxu0 0.0
        %615 = vmatprep.subr.mxu0 0.0
        %616 = vmatpush1.msra.mxu0 0.0
        %617 = vmatprep.subr.mxu0 0.0
        %618 = vmatpush1.msra.mxu0 0.0
        %619 = vmatprep.subr.mxu0 0.0
        %620 = vmatpush1.msra.mxu0 0.0
        %621 = vmatprep.subr.mxu0 0.0
        %622 = vmatpush1.msra.mxu0 0.0
        %623 = vmatprep.subr.mxu0 0.0
        %624 = vmatpush1.msra.mxu0 0.0
        %625 = vmatprep.subr.mxu0 0.0
        %626 = vmatpush1.msra.mxu0 0.0
        %627 = vmatprep.subr.mxu0 0.0
        %628 = vmatpush1.msra.mxu0 0.0
        %629 = vmatprep.subr.mxu0 0.0
        %630 = vmatpush1.msra.mxu0 0.0
        %631 = vmatprep.subr.mxu0 0.0
        %632 = vmatpush1.msra.mxu0 0.0
        %633 = vmatprep.subr.mxu0 0.0
        %634 = vmatpush1.msra.mxu0 0.0
        %635 = vmatprep.subr.mxu0 0.0
        %636 = vmatpush1.msra.mxu0 0.0
        %637 = vmatprep.subr.mxu0 0.0
        %638 = vmatpush1.msra.mxu0 0.0
        %639 = vmatprep.mubr.f32.mxu0 0.0
        %640 = vmatmul.mubr.f32.gmra.mrb[0].mxu0 %v573
        %v641 = vpop.f32.mrb[0].mxu0
        %v642 = vadd.f32 %v570, %v641
        %v643 = vpop.f32.mrb[0].mxu0
        %644 = vdwg.mxu0
        %645 = vrot.lane.b32.xlu0 %v561, 96
        %v646 = vpop.permute.xlu0 %645
        %649 = vrot.lane.b32.xlu0 %v642, 32
        %v650 = vpop.permute.xlu0 %649
        %v652 = vsel %vm571, %v646, %v650
        %v653 = vld [vmem:[#allocation7 + $0x38] sm:$0xff]
        %v654 = vld [vmem:[#allocation7 + $0x40] sm:$0xff]
        %v655 = vld [vmem:[#allocation7 + $0x48] sm:$0xff]
        %v656 = vld [vmem:[#allocation7 + $0x50] sm:$0xff]
        %v657 = vld [vmem:[#allocation7 + $0x58] sm:$0xff]
        %v658 = vld [vmem:[#allocation7 + $0x60] sm:$0xff]
        %v659 = vld [vmem:[#allocation7 + $0x68] sm:$0xff]
        %v660 = vld [vmem:[#allocation7 + $0x70] sm:$0xff]
        %v661 = vld [vmem:[#allocation7 + $0xc8] sm:$0x1]
        %v662 = vlaneseq
        %v663 = vshrl.u32 %v662, 7
        %v664 = vsub.s32 0, %v663
        %v665 = vrot.slane %v661, %v664
        %vm666 = vcmask 523264
        %v668 = vsel %vm666, %v652, 0
        %670 = vmatprep.subr.mxu0 0.0
        %671 = vmatpush1.msra.mxu0 %v653
        %672 = vmatprep.subr.mxu0 0.0
        %673 = vmatpush1.msra.mxu0 %v654
        %674 = vmatprep.subr.mxu0 0.0
        %675 = vmatpush1.msra.mxu0 %v655
        %676 = vmatprep.subr.mxu0 0.0
        %677 = vmatpush1.msra.mxu0 %v656
        %678 = vmatprep.subr.mxu0 0.0
        %679 = vmatpush1.msra.mxu0 %v657
        %680 = vmatprep.subr.mxu0 0.0
        %681 = vmatpush1.msra.mxu0 %v658
        %682 = vmatprep.subr.mxu0 0.0
        %683 = vmatpush1.msra.mxu0 %v659
        %684 = vmatprep.subr.mxu0 0.0
        %685 = vmatpush1.msra.mxu0 %v660
        %686 = vmatprep.subr.mxu0 0.0
        %687 = vmatpush1.msra.mxu0 0.0
        %688 = vmatprep.subr.mxu0 0.0
        %689 = vmatpush1.msra.mxu0 0.0
        %690 = vmatprep.subr.mxu0 0.0
        %691 = vmatpush1.msra.mxu0 0.0
        %692 = vmatprep.subr.mxu0 0.0
        %693 = vmatpush1.msra.mxu0 0.0
        %694 = vmatprep.subr.mxu0 0.0
        %695 = vmatpush1.msra.mxu0 0.0
        %696 = vmatprep.subr.mxu0 0.0
        %697 = vmatpush1.msra.mxu0 0.0
        %698 = vmatprep.subr.mxu0 0.0
        %699 = vmatpush1.msra.mxu0 0.0
        %700 = vmatprep.subr.mxu0 0.0
        %701 = vmatpush1.msra.mxu0 0.0
        %702 = vmatprep.subr.mxu0 0.0
        %703 = vmatpush1.msra.mxu0 0.0
        %704 = vmatprep.subr.mxu0 0.0
        %705 = vmatpush1.msra.mxu0 0.0
        %706 = vmatprep.subr.mxu0 0.0
        %707 = vmatpush1.msra.mxu0 0.0
        %708 = vmatprep.subr.mxu0 0.0
        %709 = vmatpush1.msra.mxu0 0.0
        %710 = vmatprep.subr.mxu0 0.0
        %711 = vmatpush1.msra.mxu0 0.0
        %712 = vmatprep.subr.mxu0 0.0
        %713 = vmatpush1.msra.mxu0 0.0
        %714 = vmatprep.subr.mxu0 0.0
        %715 = vmatpush1.msra.mxu0 0.0
        %716 = vmatprep.subr.mxu0 0.0
        %717 = vmatpush1.msra.mxu0 0.0
        %718 = vmatprep.subr.mxu0 0.0
        %719 = vmatpush1.msra.mxu0 0.0
        %720 = vmatprep.subr.mxu0 0.0
        %721 = vmatpush1.msra.mxu0 0.0
        %722 = vmatprep.subr.mxu0 0.0
        %723 = vmatpush1.msra.mxu0 0.0
        %724 = vmatprep.subr.mxu0 0.0
        %725 = vmatpush1.msra.mxu0 0.0
        %726 = vmatprep.subr.mxu0 0.0
        %727 = vmatpush1.msra.mxu0 0.0
        %728 = vmatprep.subr.mxu0 0.0
        %729 = vmatpush1.msra.mxu0 0.0
        %730 = vmatprep.subr.mxu0 0.0
        %731 = vmatpush1.msra.mxu0 0.0
        %732 = vmatprep.subr.mxu0 0.0
        %733 = vmatpush1.msra.mxu0 0.0
        %734 = vmatprep.mubr.f32.mxu0 0.0
        %735 = vmatmul.mubr.f32.gmra.mrb[0].mxu0 %v668
        %v736 = vpop.f32.mrb[0].mxu0
        %v737 = vadd.f32 %v665, %v736
        %v738 = vpop.f32.mrb[0].mxu0
        %739 = vdwg.mxu0
        %v740 = vmax.f32 %v737, 0.0
        %v741 = vld [vmem:[#allocation7 + $0x78] sm:$0xff]
        %v742 = vld [vmem:[#allocation7 + $0x80] sm:$0xff]
        %v743 = vld [vmem:[#allocation7 + $0x88] sm:$0xff]
        %v744 = vld [vmem:[#allocation7 + $0x90] sm:$0xff]
        %v745 = vld [vmem:[#allocation7 + $0x98] sm:$0xff]
        %v746 = vld [vmem:[#allocation7 + $0xa0] sm:$0xff]
        %v747 = vld [vmem:[#allocation7 + $0xa8] sm:$0xff]
        %v748 = vld [vmem:[#allocation7 + $0xb0] sm:$0xff]
        %v749 = vld [vmem:[#allocation7 + $0xd0] sm:$0x1]
        %v750 = vlaneseq
        %v751 = vshrl.u32 %v750, 7
        %v752 = vsub.s32 0, %v751
        %v753 = vrot.slane %v749, %v752
        %v755 = vsel %vm666, %v740, 0
        %757 = vmatprep.subr.mxu0 0.0
        %758 = vmatpush1.msra.mxu0 %v741
        %759 = vmatprep.subr.mxu0 0.0
        %760 = vmatpush1.msra.mxu0 %v742
        %761 = vmatprep.subr.mxu0 0.0
        %762 = vmatpush1.msra.mxu0 %v743
        %763 = vmatprep.subr.mxu0 0.0
        %764 = vmatpush1.msra.mxu0 %v744
        %765 = vmatprep.subr.mxu0 0.0
        %766 = vmatpush1.msra.mxu0 %v745
        %767 = vmatprep.subr.mxu0 0.0
        %768 = vmatpush1.msra.mxu0 %v746
        %769 = vmatprep.subr.mxu0 0.0
        %770 = vmatpush1.msra.mxu0 %v747
        %771 = vmatprep.subr.mxu0 0.0
        %772 = vmatpush1.msra.mxu0 %v748
        %773 = vmatprep.subr.mxu0 0.0
        %774 = vmatpush1.msra.mxu0 0.0
        %775 = vmatprep.subr.mxu0 0.0
        %776 = vmatpush1.msra.mxu0 0.0
        %777 = vmatprep.subr.mxu0 0.0
        %778 = vmatpush1.msra.mxu0 0.0
        %779 = vmatprep.subr.mxu0 0.0
        %780 = vmatpush1.msra.mxu0 0.0
        %781 = vmatprep.subr.mxu0 0.0
        %782 = vmatpush1.msra.mxu0 0.0
        %783 = vmatprep.subr.mxu0 0.0
        %784 = vmatpush1.msra.mxu0 0.0
        %785 = vmatprep.subr.mxu0 0.0
        %786 = vmatpush1.msra.mxu0 0.0
        %787 = vmatprep.subr.mxu0 0.0
        %788 = vmatpush1.msra.mxu0 0.0
        %789 = vmatprep.subr.mxu0 0.0
        %790 = vmatpush1.msra.mxu0 0.0
        %791 = vmatprep.subr.mxu0 0.0
        %792 = vmatpush1.msra.mxu0 0.0
        %793 = vmatprep.subr.mxu0 0.0
        %794 = vmatpush1.msra.mxu0 0.0
        %795 = vmatprep.subr.mxu0 0.0
        %796 = vmatpush1.msra.mxu0 0.0
        %797 = vmatprep.subr.mxu0 0.0
        %798 = vmatpush1.msra.mxu0 0.0
        %799 = vmatprep.subr.mxu0 0.0
        %800 = vmatpush1.msra.mxu0 0.0
        %801 = vmatprep.subr.mxu0 0.0
        %802 = vmatpush1.msra.mxu0 0.0
        %803 = vmatprep.subr.mxu0 0.0
        %804 = vmatpush1.msra.mxu0 0.0
        %805 = vmatprep.subr.mxu0 0.0
        %806 = vmatpush1.msra.mxu0 0.0
        %807 = vmatprep.subr.mxu0 0.0
        %808 = vmatpush1.msra.mxu0 0.0
        %809 = vmatprep.subr.mxu0 0.0
        %810 = vmatpush1.msra.mxu0 0.0
        %811 = vmatprep.subr.mxu0 0.0
        %812 = vmatpush1.msra.mxu0 0.0
        %813 = vmatprep.subr.mxu0 0.0
        %814 = vmatpush1.msra.mxu0 0.0
        %815 = vmatprep.subr.mxu0 0.0
        %816 = vmatpush1.msra.mxu0 0.0
        %817 = vmatprep.subr.mxu0 0.0
        %818 = vmatpush1.msra.mxu0 0.0
        %819 = vmatprep.subr.mxu0 0.0
        %820 = vmatpush1.msra.mxu0 0.0
        %821 = vmatprep.mubr.f32.mxu0 0.0
        %822 = vmatmul.mubr.f32.gmra.mrb[0].mxu0 %v755
        %v823 = vpop.f32.mrb[0].mxu0
        %v824 = vadd.f32 %v753, %v823
        %v825 = vpop.f32.mrb[0].mxu0
        %826 = vdwg.mxu0
        %827 = vst [vmem:[%s282] sm:$0xff] %v824
        %s828 = sand.u32 %s131, 1
        %s829 = scalar_lea.sflag [#allocation4], %s828
        %s830 = sand.u32 %s131, 1
        %s831 = smul.addr %s830, 8
        %s832 = scalar_lea.vmem [#allocation8], %s831
        // Predicated region
        $region49: #{tpu_custom_call.1} parent=35 // pred_check
          %p833 = pneg %p141
        $region50: #{tpu_custom_call.1} parent=35 // pred_check_branch
          %835 = sbr.rel (%p833) target = $region52
        $region51: #{tpu_custom_call.1} parent=35 // pred_region
          %s837 = ssub.s32 128, 128
          %838 = vsyncadd %s829, %s837
          %s839 = smul.addr %s24, 128
          %s840 = scalar_lea.hbm %s4, %s839
          %s842 = sshll.u32 %s832, 4
          %s843 = int_to_ptr.vmem [resolvable:$true] %s842
          %845 = dma.vmem_to_hbm [thread:$0]  %s843, 128, %s840, %s829
        $region52: #{tpu_custom_call.1} parent=35 // pred_fallthru
          _
      $region36: #{tpu_custom_call.1} parent=5 // pred_fallthru
        _
      %p846 = scmp.le.s32.totalorder 2, %s19
      // Predicated region
      $region53: #{tpu_custom_call.1} parent=5 // pred_check
        %p847 = pneg %p846
      $region54: #{tpu_custom_call.1} parent=5 // pred_check_branch
        %849 = sbr.rel (%p847) target = $region56
      $region55: #{tpu_custom_call.1} parent=5 // pred_region
        %s850 = ssub.s32 %s19, 2
        // Predicated region
        $region57: #{tpu_custom_call.1} parent=55 // pred_check
          %p851 = pneg %p147
        $region58: #{tpu_custom_call.1} parent=55 // pred_check_branch
          %853 = sbr.rel (%p851) target = $region60
        $region59: #{tpu_custom_call.1} parent=55 // pred_region
          %s854 = sand.u32 %s132, 1
          %s855 = scalar_lea.sflag [#allocation4], %s854
          %s856 = sand.u32 %s132, 1
          %s857 = smul.addr %s856, 8
          %s858 = scalar_lea.vmem [#allocation8], %s857
          %859 = dma.done %s855, 128
        $region60: #{tpu_custom_call.1} parent=55 // pred_fallthru
          _
      $region56: #{tpu_custom_call.1} parent=5 // pred_fallthru
        _
    $region6: #{tpu_custom_call.1} parent=1 // loop_footer
      %s23 = sadd.s32 1, %s19
    $region7: #{tpu_custom_call.1} parent=1 // loop_footer_branch
      %18 = sbr.rel target = $region3
    $region8: #{tpu_custom_call.1} parent=1 // loop_exit
      _
    %860 = vsyncpa [#allocation3], 1
    %s861 = scalar_lea.sflag [#allocation3], 1
    %862 = vsyncpa %s861, 1
    %863 = vsyncpa [#allocation6], 1
    %s864 = scalar_lea.sflag [#allocation6], 1
    %865 = vsyncpa %s864, 1
    %866 = vsyncpa [#allocation4], 1
    %s867 = scalar_lea.sflag [#allocation4], 1
    %868 = vsyncpa %s867, 1

</llo_original>
